<compile_context>
chip_gen: v7x
topology: tpu7x:2x2x1
jax: 0.10.0
libtpu: 0.0.40
codegen_flags: <defaults>
</compile_context>

<pallas_src>
import numpy as np
import jax
import jax.numpy as jnp
from jax.experimental import pallas as pl
from jax.experimental.pallas import tpu as pltpu

# MemoryEfficientTverskyLoss / TopKLoss constants
FP_WEIGHT = 0.8
FN_WEIGHT = 0.2
TVERSKY_SMOOTH = 1.0
TOPK_PERCENT = 10.0
VMEM_LIMIT_BYTES = 32 * 1024 * 1024   # explicit scoped-VMEM limit (safe on v5e/v6e/v7x)
TILE_VMEM_BUDGET = 12 * 1024 * 1024   # budget used to pick the spatial tile in kernel 1


# ---------------------------------------------------------------------------
# Kernel 1: fused softmax -> Tversky statistics + per-voxel cross entropy
# ---------------------------------------------------------------------------

def _tversky_ce_kernel(x_ref, y_ref, ce_ref, tv_ref, inter_acc, pred_acc, gt_acc):
    s_id = pl.program_id(1)

    @pl.when(s_id == 0)
    def _():
        inter_acc[...] = jnp.zeros_like(inter_acc)
        pred_acc[...] = jnp.zeros_like(pred_acc)
        gt_acc[...] = jnp.zeros_like(gt_acc)

    x = x_ref[...]                                     # (1, C, T) f32 logits
    y = y_ref[...]                                     # (1, 1, T) i32 labels

    # channel softmax (softmax_helper_dim1): one reciprocal per voxel, C multiplies
    m = jnp.max(x, axis=1, keepdims=True)              # (1, 1, T)
    e = jnp.exp(x - m)                                 # (1, C, T)
    se = jnp.sum(e, axis=1, keepdims=True)             # (1, 1, T)
    inv = pl.reciprocal(se)                            # exact; reciprocal-multiply instead of C-wide divide
    p = e * inv                                        # (1, C, T) softmax probabilities

    # one-hot as a bool predicate (no f32 one-hot materialized)
    cls = jax.lax.broadcasted_iota(jnp.int32, x.shape, 1)
    is_tgt = cls == y                                  # (1, C, T)

    inter_acc[...] += jnp.sum(jnp.where(is_tgt, p, 0.0), axis=2)
    pred_acc[...] += jnp.sum(p, axis=2)
    gt_acc[...] += jnp.sum(is_tgt.astype(jnp.float32), axis=2)

    # per-voxel cross entropy: logsumexp(x) - x[target]  (reuses exp/sum above)
    lse = m + jnp.log(se)                              # (1, 1, T)
    x_t = jnp.sum(jnp.where(is_tgt, x, 0.0), axis=1, keepdims=True)
    ce_ref[...] = jnp.maximum(lse - x_t, 0.0)          # CE >= 0 (clamp fp rounding)

    @pl.when(s_id == pl.num_programs(1) - 1)
    def _():
        inter = inter_acc[...]                         # (1, C)
        denom = inter + FP_WEIGHT * pred_acc[...] + FN_WEIGHT * gt_acc[...] + TVERSKY_SMOOTH
        tv_ref[0] = 1.0 - inter / denom                # Tversky loss per (b, c)


def _pick_tile(s, c, vmem_budget=TILE_VMEM_BUDGET):
    # bytes per lane of spatial tile: x (pad8(C) sublanes) + y (8) + ce (8),
    # f32/i32, double-buffered by the pipeline.
    padded_c = max(8, ((c + 7) // 8) * 8)
    bytes_per_lane = 2 * 4 * (padded_c + 8 + 8)
    max_t = max(128, (vmem_budget // bytes_per_lane // 128) * 128)
    t = min(s, max_t)
    t = (t // 128) * 128
    while s % t != 0:
        t -= 128
    return t


def tversky_ce_pallas(x_bcs, y_b1s):
    B, C, S = x_bcs.shape
    T = _pick_tile(S, C)
    return pl.pallas_call(
        _tversky_ce_kernel,
        out_shape=(
            jax.ShapeDtypeStruct((B, 1, S), jnp.float32),   # per-voxel CE (lane-dense)
            jax.ShapeDtypeStruct((B, 1, C), jnp.float32),   # Tversky loss per (b, c)
        ),
        grid_spec=pltpu.PrefetchScalarGridSpec(
            num_scalar_prefetch=0,
            grid=(B, S // T),
            in_specs=[
                pl.BlockSpec((1, C, T), lambda b, s: (b, 0, s)),
                pl.BlockSpec((1, 1, T), lambda b, s: (b, 0, s)),
            ],
            out_specs=(
                pl.BlockSpec((1, 1, T), lambda b, s: (b, 0, s)),
                pl.BlockSpec((1, 1, C), lambda b, s: (b, 0, 0)),
            ),
            scratch_shapes=[
                pltpu.VMEM((1, C), jnp.float32),
                pltpu.VMEM((1, C), jnp.float32),
                pltpu.VMEM((1, C), jnp.float32),
            ],
        ),
        compiler_params=pltpu.CompilerParams(
            dimension_semantics=("parallel", "arbitrary"),   # batch parallel (v7x 2 TCs), S is the reduction
            vmem_limit_bytes=VMEM_LIMIT_BYTES,
        ),
    )(x_bcs, y_b1s)


# ---------------------------------------------------------------------------
# Kernel 2: exact top-k mean of the per-voxel CE (threshold selection)
# ---------------------------------------------------------------------------

def _make_topk_kernel(k_count):
    kf = float(k_count)

    def kernel(ce_ref, out_ref):
        ce = ce_ref[...]                                   # (R, 128) f32, all >= 0
        # For nonnegative f32, the int32 bit pattern is monotone in value, so the
        # exact k-th largest value is found by a 31-step greedy MSB->LSB binary
        # search over bit patterns: one VPU compare + one cross-lane count per
        # step (vs an O(k*S) iterative max-extraction).
        ce_bits = pltpu.bitcast(ce, jnp.int32)             # (R, 128) i32
        k_vec = jnp.full((1, 1), k_count, jnp.int32)

        bits = jnp.zeros((1, 1), jnp.int32)
        for b in range(30, -1, -1):                        # unrolled, constant masks
            cand = bits | jnp.int32(1 << b)
            cnt = jnp.sum((ce_bits >= cand).astype(jnp.int32), keepdims=True)
            bits = jnp.where(cnt >= k_vec, cand, bits)

        # bit pattern `bits` is guaranteed to occur in ce -> recover its float value
        kth = jnp.max(jnp.where(ce_bits == bits, ce, -1.0), keepdims=True)   # (1, 1)
        gt = ce_bits > bits
        cnt_gt = jnp.sum(gt.astype(jnp.int32), keepdims=True)
        sum_gt = jnp.sum(jnp.where(gt, ce, 0.0), keepdims=True)
        # tie correction: pad with (k - cnt_gt) copies of the k-th value
        total = sum_gt + (k_vec - cnt_gt).astype(jnp.float32) * kth
        out_ref[...] = jnp.zeros((1, 128), jnp.float32) + total * (1.0 / kf)

    return kernel


def topk_ce_mean(ce_rows_128, k_count):
    # TODO(synk): for very large 3D volumes (CE > ~16 MB) the single-block
    # count/sum passes should be tiled over rows with a two-pass histogram;
    # fine for typical nnU-Net patch sizes.
    R, L = ce_rows_128.shape
    out = pl.pallas_call(
        _make_topk_kernel(k_count),
        out_shape=jax.ShapeDtypeStruct((1, 128), jnp.float32),
        grid_spec=pltpu.PrefetchScalarGridSpec(
            num_scalar_prefetch=0,
            grid=(1,),
            in_specs=[pl.BlockSpec((R, L), lambda i: (0, 0))],
            out_specs=pl.BlockSpec((1, 128), lambda i: (0, 0)),
        ),
        compiler_params=pltpu.CompilerParams(
            dimension_semantics=("arbitrary",),
            vmem_limit_bytes=VMEM_LIMIT_BYTES,
        ),
    )(ce_rows_128)
    return out[0, 0]


# ---------------------------------------------------------------------------
# Wrapper (Tversky_TopKLoss.forward, ignore_label=None, weight_ce=weight_dice=1)
# ---------------------------------------------------------------------------

def tversky_topk_loss(x, y, weight_ce=1.0, weight_dice=1.0):
    """x: (B, C, *spatial) f32 logits; y: (B, 1, *spatial) integer labels -> scalar loss."""
    B, C = x.shape[0], x.shape[1]
    S = int(np.prod(x.shape[2:]))
    assert S % 128 == 0, "flattened spatial dim must be lane aligned"
    # TODO(synk): loss_mask / ignore_label paths of the PyTorch module are not implemented
    # (defaults: ignore_label=None, loss_mask=None).

    x_bcs = jnp.asarray(x, jnp.float32).reshape(B, C, S)
    y_b1s = jnp.asarray(y, jnp.int32).reshape(B, 1, S)

    ce, tv = tversky_ce_pallas(x_bcs, y_b1s)          # (B, 1, S), (B, 1, C)
    dc_loss = jnp.mean(tv)                            # mean over (b, c): batch_dice=False, do_bg=True

    num_voxels = B * S
    k_count = max(int(num_voxels * TOPK_PERCENT / 100), 1)
    # re-pack CE so every (8,128) vreg is fully populated in the top-k kernel
    ce_rows = ce.reshape(num_voxels // 128, 128)
    ce_loss = topk_ce_mean(ce_rows, k_count)

    return weight_ce * ce_loss + weight_dice * dc_loss


# ---------------------------------------------------------------------------
# Pure numpy reference (mirrors the PyTorch semantics)
# ---------------------------------------------------------------------------

def _reference_loss(x, y, weight_ce=1.0, weight_dice=1.0):
    B, C = x.shape[0], x.shape[1]
    x = x.astype(np.float64)
    m = x.max(axis=1, keepdims=True)
    e = np.exp(x - m)
    p = e / e.sum(axis=1, keepdims=True)
    yoh = np.zeros_like(x)
    for c in range(C):
        yoh[:, c] = (y[:, 0] == c)
    axes = tuple(range(2, x.ndim))
    intersect = (p * yoh).sum(axis=axes)
    sum_pred = p.sum(axis=axes)
    sum_gt = yoh.sum(axis=axes)
    tversky = intersect / (intersect + FP_WEIGHT * sum_pred + FN_WEIGHT * sum_gt + TVERSKY_SMOOTH)
    dc_loss = (1.0 - tversky).mean()

    lse = m + np.log(e.sum(axis=1, keepdims=True))             # (B, 1, ...)
    x_t = np.take_along_axis(x, y.astype(np.int64), axis=1)    # (B, 1, ...)
    ce = (lse - x_t)[:, 0]                                     # (B, ...)
    flat = np.sort(ce.reshape(-1))[::-1]
    k_count = max(int(flat.size * TOPK_PERCENT / 100), 1)
    ce_loss = flat[:k_count].mean()
    return weight_ce * ce_loss + weight_dice * dc_loss


# ---------------------------------------------------------------------------

if __name__ == "__main__":
    B, C, H, W = 2, 4, 16, 16
    key = jax.random.PRNGKey(0)
    x = jax.random.normal(key, (B, C, H, W), dtype=jnp.float32)

    # deterministic multi-class label map (values in [0, C))
    y_np = np.zeros((B, 1, H, W), dtype=np.int32)
    y_np[0, 0, 2:5, 2:5] = 1
    y_np[0, 0, 10:13, 8:11] = 2
    y_np[1, 0, 1:4, 11:14] = 3
    y_np[1, 0, 8:12, 2:5] = 1
    y_np[1, 0, 13:15, 13:15] = 2
    y = jnp.asarray(y_np)

    loss = jax.block_until_ready(tversky_topk_loss(x, y))

    ref = _reference_loss(np.asarray(x, dtype=np.float32), y_np)
    assert np.isfinite(float(loss))
    np.testing.assert_allclose(float(loss), float(ref), rtol=1e-4, atol=1e-4)
    print("KERNEL_OK")
</pallas_src>

<mosaic_0001>
module attributes {stable_mosaic.version = 11 : i64} {
  func.func @_tversky_ce_kernel(%arg0: i32, %arg1: i32, %arg2: memref<1x4x256xf32, #tpu.memory_space<vmem>>, %arg3: memref<1x1x256xi32, #tpu.memory_space<vmem>>, %arg4: memref<1x1x256xf32, #tpu.memory_space<vmem>>, %arg5: memref<1x1x4xf32, #tpu.memory_space<vmem>>, %arg6: memref<1x4xf32, #tpu.memory_space<vmem>>, %arg7: memref<1x4xf32, #tpu.memory_space<vmem>>, %arg8: memref<1x4xf32, #tpu.memory_space<vmem>>) attributes {dimension_semantics = [#tpu.dimension_semantics<parallel>, #tpu.dimension_semantics<arbitrary>], iteration_bounds = array<i64: 2, 1>, scalar_prefetch = 0 : i64, scratch_operands = 3 : i64, tpu.core_type = #tpu.core_type<tc>, window_params = [{transform_indices = @transform_0, window_bounds = array<i64: 1, 4, 256>}, {transform_indices = @transform_1, window_bounds = array<i64: 1, 1, 256>}, {transform_indices = @transform_2, window_bounds = array<i64: 1, 1, 256>}, {transform_indices = @transform_3, window_bounds = array<i64: 1, 1, 4>}]} {
    %c0_i32 = arith.constant 0 : i32
    %0 = arith.cmpi eq, %arg1, %c0_i32 : i32
    %1 = arith.extui %0 : i1 to i32
    %c0_i32_0 = arith.constant 0 : i32
    %2 = arith.cmpi ne, %1, %c0_i32_0 : i32
    scf.if %2 {
      %cst_31 = arith.constant 0.000000e+00 : f32
      %47 = vector.broadcast %cst_31 : f32 to vector<1x4xf32>
      %c0_32 = arith.constant 0 : index
      %c0_33 = arith.constant 0 : index
      %48 = vector.load %arg6[%c0_32, %c0_33] : memref<1x4xf32, #tpu.memory_space<vmem>>, vector<1x4xf32>
      tpu.vector_store %arg6[%c0_32, %c0_33], %47 {strides = array<i32>} : memref<1x4xf32, #tpu.memory_space<vmem>>, vector<1x4xf32>,
      %cst_34 = arith.constant 0.000000e+00 : f32
      %49 = vector.broadcast %cst_34 : f32 to vector<1x4xf32>
      %c0_35 = arith.constant 0 : index
      %c0_36 = arith.constant 0 : index
      %50 = vector.load %arg7[%c0_35, %c0_36] : memref<1x4xf32, #tpu.memory_space<vmem>>, vector<1x4xf32>
      tpu.vector_store %arg7[%c0_35, %c0_36], %49 {strides = array<i32>} : memref<1x4xf32, #tpu.memory_space<vmem>>, vector<1x4xf32>,
      %cst_37 = arith.constant 0.000000e+00 : f32
      %51 = vector.broadcast %cst_37 : f32 to vector<1x4xf32>
      %c0_38 = arith.constant 0 : index
      %c0_39 = arith.constant 0 : index
      %52 = vector.load %arg8[%c0_38, %c0_39] : memref<1x4xf32, #tpu.memory_space<vmem>>, vector<1x4xf32>
      tpu.vector_store %arg8[%c0_38, %c0_39], %51 {strides = array<i32>} : memref<1x4xf32, #tpu.memory_space<vmem>>, vector<1x4xf32>,
    } else {
    }
    %c0 = arith.constant 0 : index
    %c0_1 = arith.constant 0 : index
    %c0_2 = arith.constant 0 : index
    %3 = vector.load %arg2[%c0, %c0_1, %c0_2] : memref<1x4x256xf32, #tpu.memory_space<vmem>>, vector<1x4x256xf32>
    %c0_3 = arith.constant 0 : index
    %c0_4 = arith.constant 0 : index
    %c0_5 = arith.constant 0 : index
    %4 = vector.load %arg3[%c0_3, %c0_4, %c0_5] : memref<1x1x256xi32, #tpu.memory_space<vmem>>, vector<1x1x256xi32>
    %cst = arith.constant dense<0xFF800000> : vector<1x256xf32>
    %5 = vector.multi_reduction <maximumf>, %3, %cst [1] : vector<1x4x256xf32> to vector<1x256xf32>
    %6 = vector.shape_cast %5 : vector<1x256xf32> to vector<1x1x256xf32>
    %7 = vector.broadcast %6 : vector<1x1x256xf32> to vector<1x4x256xf32>
    %8 = arith.subf %3, %7 : vector<1x4x256xf32>
    %9 = math.exp %8 : vector<1x4x256xf32>
    %cst_6 = arith.constant dense<0.000000e+00> : vector<1x256xf32>
    %10 = vector.multi_reduction <add>, %9, %cst_6 [1] : vector<1x4x256xf32> to vector<1x256xf32>
    %11 = vector.shape_cast %10 : vector<1x256xf32> to vector<1x1x256xf32>
    %12 = tpu.reciprocal %11 : vector<1x1x256xf32> -> vector<1x1x256xf32>
    %13 = vector.broadcast %12 : vector<1x1x256xf32> to vector<1x4x256xf32>
    %14 = arith.mulf %9, %13 : vector<1x4x256xf32>
    %15 = tpu.iota {dimensions = array<i32: 1>} : vector<1x4x256xi32>
    %16 = vector.broadcast %4 : vector<1x1x256xi32> to vector<1x4x256xi32>
    %17 = arith.cmpi eq, %15, %16 : vector<1x4x256xi32>
    %c0_7 = arith.constant 0 : index
    %c0_8 = arith.constant 0 : index
    %18 = vector.load %arg6[%c0_7, %c0_8] : memref<1x4xf32, #tpu.memory_space<vmem>>, vector<1x4xf32>
    %cst_9 = arith.constant 0.000000e+00 : f32
    %19 = vector.broadcast %cst_9 : f32 to vector<1x4x256xf32>
    %20 = arith.select %17, %14, %19 : vector<1x4x256xi1>, vector<1x4x256xf32>
    %cst_10 = arith.constant dense<0.000000e+00> : vector<1x4xf32>
    %21 = vector.multi_reduction <add>, %20, %cst_10 [2] : vector<1x4x256xf32> to vector<1x4xf32>
    %22 = arith.addf %18, %21 : vector<1x4xf32>
    %c0_11 = arith.constant 0 : index
    %c0_12 = arith.constant 0 : index
    %23 = vector.load %arg6[%c0_11, %c0_12] : memref<1x4xf32, #tpu.memory_space<vmem>>, vector<1x4xf32>
    tpu.vector_store %arg6[%c0_11, %c0_12], %22 {strides = array<i32>} : memref<1x4xf32, #tpu.memory_space<vmem>>, vector<1x4xf32>,
    %c0_13 = arith.constant 0 : index
    %c0_14 = arith.constant 0 : index
    %24 = vector.load %arg7[%c0_13, %c0_14] : memref<1x4xf32, #tpu.memory_space<vmem>>, vector<1x4xf32>
    %cst_15 = arith.constant dense<0.000000e+00> : vector<1x4xf32>
    %25 = vector.multi_reduction <add>, %14, %cst_15 [2] : vector<1x4x256xf32> to vector<1x4xf32>
    %26 = arith.addf %24, %25 : vector<1x4xf32>
    %c0_16 = arith.constant 0 : index
    %c0_17 = arith.constant 0 : index
    %27 = vector.load %arg7[%c0_16, %c0_17] : memref<1x4xf32, #tpu.memory_space<vmem>>, vector<1x4xf32>
    tpu.vector_store %arg7[%c0_16, %c0_17], %26 {strides = array<i32>} : memref<1x4xf32, #tpu.memory_space<vmem>>, vector<1x4xf32>,
    %c0_18 = arith.constant 0 : index
    %c0_19 = arith.constant 0 : index
    %28 = vector.load %arg8[%c0_18, %c0_19] : memref<1x4xf32, #tpu.memory_space<vmem>>, vector<1x4xf32>
    %29 = arith.extui %17 : vector<1x4x256xi1> to vector<1x4x256xi32>
    %30 = arith.sitofp %29 : vector<1x4x256xi32> to vector<1x4x256xf32>
    %cst_20 = arith.constant dense<0.000000e+00> : vector<1x4xf32>
    %31 = vector.multi_reduction <add>, %30, %cst_20 [2] : vector<1x4x256xf32> to vector<1x4xf32>
    %32 = arith.addf %28, %31 : vector<1x4xf32>
    %c0_21 = arith.constant 0 : index
    %c0_22 = arith.constant 0 : index
    %33 = vector.load %arg8[%c0_21, %c0_22] : memref<1x4xf32, #tpu.memory_space<vmem>>, vector<1x4xf32>
    tpu.vector_store %arg8[%c0_21, %c0_22], %32 {strides = array<i32>} : memref<1x4xf32, #tpu.memory_space<vmem>>, vector<1x4xf32>,
    %34 = math.log %11 : vector<1x1x256xf32>
    %35 = arith.addf %6, %34 : vector<1x1x256xf32>
    %cst_23 = arith.constant 0.000000e+00 : f32
    %36 = vector.broadcast %cst_23 : f32 to vector<1x4x256xf32>
    %37 = arith.select %17, %3, %36 : vector<1x4x256xi1>, vector<1x4x256xf32>
    %cst_24 = arith.constant dense<0.000000e+00> : vector<1x256xf32>
    %38 = vector.multi_reduction <add>, %37, %cst_24 [1] : vector<1x4x256xf32> to vector<1x256xf32>
    %39 = vector.shape_cast %38 : vector<1x256xf32> to vector<1x1x256xf32>
    %40 = arith.subf %35, %39 : vector<1x1x256xf32>
    %cst_25 = arith.constant 0.000000e+00 : f32
    %41 = vector.broadcast %cst_25 : f32 to vector<1x1x256xf32>
    %42 = arith.maximumf %40, %41 : vector<1x1x256xf32>
    %c0_26 = arith.constant 0 : index
    %c0_27 = arith.constant 0 : index
    %c0_28 = arith.constant 0 : index
    %43 = vector.load %arg4[%c0_26, %c0_27, %c0_28] : memref<1x1x256xf32, #tpu.memory_space<vmem>>, vector<1x1x256xf32>
    tpu.vector_store %arg4[%c0_26, %c0_27, %c0_28], %42 {strides = array<i32>} : memref<1x1x256xf32, #tpu.memory_space<vmem>>, vector<1x1x256xf32>,
    %c0_i32_29 = arith.constant 0 : i32
    %44 = arith.cmpi eq, %arg1, %c0_i32_29 : i32
    %45 = arith.extui %44 : i1 to i32
    %c0_i32_30 = arith.constant 0 : i32
    %46 = arith.cmpi ne, %45, %c0_i32_30 : i32
    scf.if %46 {
      %c0_31 = arith.constant 0 : index
      %c0_32 = arith.constant 0 : index
      %47 = vector.load %arg6[%c0_31, %c0_32] : memref<1x4xf32, #tpu.memory_space<vmem>>, vector<1x4xf32>
      %c0_33 = arith.constant 0 : index
      %c0_34 = arith.constant 0 : index
      %48 = vector.load %arg7[%c0_33, %c0_34] : memref<1x4xf32, #tpu.memory_space<vmem>>, vector<1x4xf32>
      %cst_35 = arith.constant 8.000000e-01 : f32
      %49 = vector.broadcast %cst_35 : f32 to vector<1x4xf32>
      %50 = arith.mulf %49, %48 : vector<1x4xf32>
      %51 = arith.addf %47, %50 : vector<1x4xf32>
      %c0_36 = arith.constant 0 : index
      %c0_37 = arith.constant 0 : index
      %52 = vector.load %arg8[%c0_36, %c0_37] : memref<1x4xf32, #tpu.memory_space<vmem>>, vector<1x4xf32>
      %cst_38 = arith.constant 2.000000e-01 : f32
      %53 = vector.broadcast %cst_38 : f32 to vector<1x4xf32>
      %54 = arith.mulf %53, %52 : vector<1x4xf32>
      %55 = arith.addf %51, %54 : vector<1x4xf32>
      %cst_39 = arith.constant 1.000000e+00 : f32
      %56 = vector.broadcast %cst_39 : f32 to vector<1x4xf32>
      %57 = arith.addf %55, %56 : vector<1x4xf32>
      %58 = arith.divf %47, %57 : vector<1x4xf32>
      %cst_40 = arith.constant 1.000000e+00 : f32
      %59 = vector.broadcast %cst_40 : f32 to vector<1x4xf32>
      %60 = arith.subf %59, %58 : vector<1x4xf32>
      %c0_41 = arith.constant 0 : index
      %c0_42 = arith.constant 0 : index
      %c0_43 = arith.constant 0 : index
      %61 = vector.load %arg5[%c0_41, %c0_42, %c0_43] : memref<1x1x4xf32, #tpu.memory_space<vmem>>, vector<1x1x4xf32>
      %62 = vector.shape_cast %61 : vector<1x1x4xf32> to vector<1x4xf32>
      %63 = vector.shape_cast %60 : vector<1x4xf32> to vector<1x1x4xf32>
      tpu.vector_store %arg5[%c0_41, %c0_42, %c0_43], %63 {strides = array<i32>} : memref<1x1x4xf32, #tpu.memory_space<vmem>>, vector<1x1x4xf32>,
    } else {
    }
    return
  }
  func.func @transform_0(%arg0: i32, %arg1: i32) -> (i32, i32, i32) {
    %c0_i32 = arith.constant 0 : i32
    %c0_i32_0 = arith.constant 0 : i32
    return %arg0, %c0_i32, %arg1 : i32, i32, i32
  }
  func.func @transform_1(%arg0: i32, %arg1: i32) -> (i32, i32, i32) {
    %c0_i32 = arith.constant 0 : i32
    %c0_i32_0 = arith.constant 0 : i32
    return %arg0, %c0_i32, %arg1 : i32, i32, i32
  }
  func.func @transform_2(%arg0: i32, %arg1: i32) -> (i32, i32, i32) {
    %c0_i32 = arith.constant 0 : i32
    %c0_i32_0 = arith.constant 0 : i32
    return %arg0, %c0_i32, %arg1 : i32, i32, i32
  }
  func.func @transform_3(%arg0: i32, %arg1: i32) -> (i32, i32, i32) {
    %c0_i32 = arith.constant 0 : i32
    %c0_i32_0 = arith.constant 0 : i32
    %c0_i32_1 = arith.constant 0 : i32
    return %arg0, %c0_i32, %c0_i32_0 : i32, i32, i32
  }
}

</mosaic_0001>

<llo_original>
// kernel: tpu_custom_call.1
$region0: #{tpu_custom_call.1}
  #allocation0 [shape = 'u32[]', space=smem, size = 0x4, offset = 0x4, fixed_abs, tag = 'smem constant byte address 0x4 - core index']
  #allocation1 [shape = 'u32[144,128]{1,0:T(1,128)}', space=vmem, size = 0x12000, scoped, tag = 'internal scratch']
  #allocation2 [shape = 'f32[1,4]{1,0:T(1,128)}', space=vmem, size = 0x200, scoped, tag = 'scratch operand']
  #allocation3 [shape = 'f32[1,4]{1,0:T(1,128)}', space=vmem, size = 0x200, scoped, tag = 'scratch operand']
  #allocation4 [shape = 'f32[1,4]{1,0:T(1,128)}', space=vmem, size = 0x200, scoped, tag = 'scratch operand']
  %s0 = inlined_call_operand.hbm [shape: f32[2,4,256], index: 0, kind: input, shape index: {}]
  %s1 = inlined_call_operand.hbm [shape: s32[2,1,256], index: 1, kind: input, shape index: {}]
  %s2 = inlined_call_operand.hbm [shape: f32[2,1,256], index: 2, kind: output, shape index: {0}]
  %s3 = inlined_call_operand.hbm [shape: f32[2,1,4], index: 3, kind: output, shape index: {1}]
  %4 = xla_tuple %s2, %s3
  %s5 = sld [smem:[#allocation0]]
  $region65: #{tpu_custom_call.1} parent=0
    _
  %s7 = ssub.s32 1, %s5
  %s8 = scalar_select 0, %s7, %s5
  $region1: #{tpu_custom_call.1} parent=0
    #allocation5 [shape = 'u8[8192]{0}', space=vmem, size = 0x2000, scoped, tag = 'input window, operand 0']
    #allocation6 [shape = 's32[2]{0}', space=sflag, size = 0x8, scoped, tag = 'scoped memory for tpu_custom_call.1']
    #allocation7 [shape = 's32[2]{0}', space=sflag, size = 0x8, scoped, tag = 'scoped memory for tpu_custom_call.1']
    #allocation8 [shape = 'u8[2048]{0}', space=vmem, size = 0x800, scoped, tag = 'input window, operand 1']
    #allocation9 [shape = 's32[2]{0}', space=sflag, size = 0x8, scoped, tag = 'scoped memory for tpu_custom_call.1']
    #allocation10 [shape = 'u8[2048]{0}', space=vmem, size = 0x800, scoped, tag = 'output window, operand 0']
    #allocation11 [shape = 'u8[1024]{0}', space=vmem, size = 0x400, scoped, tag = 'output window, operand 1']
    #allocation12 [shape = 's32[2]{0}', space=sflag, size = 0x8, scoped, tag = 'scoped memory for tpu_custom_call.1']
    %9 = vsyncpa [#allocation6], 0
    %s10 = scalar_lea.sflag [#allocation6], 1
    %11 = vsyncpa %s10, 0
    %12 = vsyncpa [#allocation9], 0
    %s13 = scalar_lea.sflag [#allocation9], 1
    %14 = vsyncpa %s13, 0
    %15 = vsyncpa [#allocation7], 0
    %s16 = scalar_lea.sflag [#allocation7], 1
    %17 = vsyncpa %s16, 0
    %18 = vsyncpa [#allocation12], 0
    %s19 = scalar_lea.sflag [#allocation12], 1
    %20 = vsyncpa %s19, 0
    loop: start=0, step=1, limit=4
    $region2: #{tpu_custom_call.1} parent=1 // loop_pre_header
      _
    $region3: #{tpu_custom_call.1} parent=1 // loop_header
      %s22 = sphi 0, %s26
      %p23 = scmp.ge.s32.totalorder %s22, 4
      %s29 = sphi 0, %s41
      %s30 = sphi 0, %s37
      %s31 = sphi 0, %s29
      %s32 = sphi 0, %s30
      %s33 = sphi 0, %s31
      %s34 = sphi 0, %s32
      %s46 = sphi 0, %s48
      %s49 = sphi 0, %s46
      %s50 = sphi 0, %s49
      %s66 = sphi 0, %s50
      %s74 = sphi 0, %s76
      %s77 = sphi 0, %s74
      %s78 = sphi 0, %s77
      %s94 = sphi 0, %s78
      %s102 = sphi 0, %s104
      %s105 = sphi 0, %s102
      %s106 = sphi 0, %s105
      %s122 = sphi 0, %s106
      %s128 = sphi 0, %s130
      %s131 = sphi 0, %s128
      %s132 = sphi 0, %s131
      %s148 = sphi 0, %s132
    $region4: #{tpu_custom_call.1} parent=1 // loop_header_branch
      %25 = sbr.rel (%p23) target = $region8
    $region5: #{tpu_custom_call.1} parent=1 // loop_body
      %s27 = ssub.s32 %s22, 1
      %s28 = ssub.s32 %s22, 2
      %s35 = sadd.s32 1, %s30
      %p36 = scmp.ge.s32.totalorder %s35, 1
      %s37 = scalar_select %p36, 0, %s35
      %s38 = sadd.s32 1, %s29
      %s39 = scalar_select %p36, %s38, %s29
      %p40 = scmp.ge.s32.totalorder %s39, 2
      %s41 = scalar_select %p40, 0, %s39
      %s42 = ssub.s32 %s29, %s41
      %s43 = ssub.s32 %s30, %s37
      %s44 = sor.u32 %s42, %s43
      %p45 = scmp.eq.s32.totalorder %s44, 0
      %s47 = sadd.s32 %s46, 1
      %s48 = scalar_select %p45, %s46, %s47
      %p51 = pneg %p45
      %p52 = scmp.eq.s32.totalorder %s22, 1
      %p53 = por %p51, %p52
      %p54 = scmp.ne.s32.totalorder %s46, %s49
      %p55 = scmp.eq.s32.totalorder %s22, 0
      %p56 = por %p54, %p55
      %p57 = scmp.ne.s32.totalorder %s46, %s49
      %p58 = scmp.eq.s32.totalorder %s27, 1
      %p59 = por %p57, %p58
      %p60 = scmp.ne.s32.totalorder %s49, %s50
      %p61 = scmp.eq.s32.totalorder %s27, 0
      %p62 = por %p60, %p61
      %p63 = scmp.ne.s32.totalorder %s49, %s50
      %p64 = scmp.eq.s32.totalorder %s28, 1
      %p65 = por %p63, %p64
      %p67 = scmp.ne.s32.totalorder %s50, %s66
      %p68 = scmp.eq.s32.totalorder %s28, 0
      %p69 = por %p67, %p68
      %s70 = ssub.s32 %s29, %s41
      %s71 = ssub.s32 %s30, %s37
      %s72 = sor.u32 %s70, %s71
      %p73 = scmp.eq.s32.totalorder %s72, 0
      %s75 = sadd.s32 %s74, 1
      %s76 = scalar_select %p73, %s74, %s75
      %p79 = pneg %p73
      %p80 = scmp.eq.s32.totalorder %s22, 1
      %p81 = por %p79, %p80
      %p82 = scmp.ne.s32.totalorder %s74, %s77
      %p83 = scmp.eq.s32.totalorder %s22, 0
      %p84 = por %p82, %p83
      %p85 = scmp.ne.s32.totalorder %s74, %s77
      %p86 = scmp.eq.s32.totalorder %s27, 1
      %p87 = por %p85, %p86
      %p88 = scmp.ne.s32.totalorder %s77, %s78
      %p89 = scmp.eq.s32.totalorder %s27, 0
      %p90 = por %p88, %p89
      %p91 = scmp.ne.s32.totalorder %s77, %s78
      %p92 = scmp.eq.s32.totalorder %s28, 1
      %p93 = por %p91, %p92
      %p95 = scmp.ne.s32.totalorder %s78, %s94
      %p96 = scmp.eq.s32.totalorder %s28, 0
      %p97 = por %p95, %p96
      %s98 = ssub.s32 %s29, %s41
      %s99 = ssub.s32 %s30, %s37
      %s100 = sor.u32 %s98, %s99
      %p101 = scmp.eq.s32.totalorder %s100, 0
      %s103 = sadd.s32 %s102, 1
      %s104 = scalar_select %p101, %s102, %s103
      %p107 = pneg %p101
      %p108 = scmp.eq.s32.totalorder %s22, 1
      %p109 = por %p107, %p108
      %p110 = scmp.ne.s32.totalorder %s102, %s105
      %p111 = scmp.eq.s32.totalorder %s22, 0
      %p112 = por %p110, %p111
      %p113 = scmp.ne.s32.totalorder %s102, %s105
      %p114 = scmp.eq.s32.totalorder %s27, 1
      %p115 = por %p113, %p114
      %p116 = scmp.ne.s32.totalorder %s105, %s106
      %p117 = scmp.eq.s32.totalorder %s27, 0
      %p118 = por %p116, %p117
      %p119 = scmp.ne.s32.totalorder %s105, %s106
      %p120 = scmp.eq.s32.totalorder %s28, 1
      %p121 = por %p119, %p120
      %p123 = scmp.ne.s32.totalorder %s106, %s122
      %p124 = scmp.eq.s32.totalorder %s28, 0
      %p125 = por %p123, %p124
      %s126 = ssub.s32 %s29, %s41
      %p127 = scmp.eq.s32.totalorder %s126, 0
      %s129 = sadd.s32 %s128, 1
      %s130 = scalar_select %p127, %s128, %s129
      %p133 = pneg %p127
      %p134 = scmp.eq.s32.totalorder %s22, 1
      %p135 = por %p133, %p134
      %p136 = scmp.ne.s32.totalorder %s128, %s131
      %p137 = scmp.eq.s32.totalorder %s22, 0
      %p138 = por %p136, %p137
      %p139 = scmp.ne.s32.totalorder %s128, %s131
      %p140 = scmp.eq.s32.totalorder %s27, 1
      %p141 = por %p139, %p140
      %p142 = scmp.ne.s32.totalorder %s131, %s132
      %p143 = scmp.eq.s32.totalorder %s27, 0
      %p144 = por %p142, %p143
      %p145 = scmp.ne.s32.totalorder %s131, %s132
      %p146 = scmp.eq.s32.totalorder %s28, 1
      %p147 = por %p145, %p146
      %p149 = scmp.ne.s32.totalorder %s132, %s148
      %p150 = scmp.eq.s32.totalorder %s28, 0
      %p151 = por %p149, %p150
      %p152 = scmp.le.s32.totalorder 1, %s22
      %p153 = scmp.lt.s32.totalorder %s22, 3
      %p154 = pnand %p152, %p153
      %p155 = pneg %p154
      // Predicated region
      $region9: #{tpu_custom_call.1} parent=5 // pred_check
        _
      $region10: #{tpu_custom_call.1} parent=5 // pred_check_branch
        %157 = sbr.rel (%p154) target = $region12
      $region11: #{tpu_custom_call.1} parent=5 // pred_region
        %s158 = ssub.s32 %s22, 1
      $region12: #{tpu_custom_call.1} parent=5 // pred_fallthru
        _
      %p159 = scmp.lt.s32.totalorder %s22, 2
      // Predicated region
      $region13: #{tpu_custom_call.1} parent=5 // pred_check
        %p160 = pneg %p159
      $region14: #{tpu_custom_call.1} parent=5 // pred_check_branch
        %162 = sbr.rel (%p160) target = $region16
      $region15: #{tpu_custom_call.1} parent=5 // pred_region
        // Predicated region
        $region17: #{tpu_custom_call.1} parent=15 // pred_check
          %p163 = pneg %p56
        $region18: #{tpu_custom_call.1} parent=15 // pred_check_branch
          %165 = sbr.rel (%p163) target = $region20
        $region19: #{tpu_custom_call.1} parent=15 // pred_region
          %s166 = sand.u32 %s46, 1
          %s167 = scalar_lea.sflag [#allocation6], %s166
          %s168 = sand.u32 %s46, 1
          %s169 = smul.addr %s168, 8
          %s170 = scalar_lea.vmem [#allocation5], %s169
          %s171 = smul.u32 2, %s30
          %s173 = ssub.s32 128, 128
          %174 = vsyncadd %s167, %s173
          %s175 = smul.addr %s29, 2
          %s176 = sadd.s32 %s171, %s175
          %s177 = smul.addr %s176, 64
          %s178 = scalar_lea.hbm %s0, %s177
          %s180 = sshll.u32 %s170, 4
          %s181 = int_to_ptr.vmem [resolvable:$true] %s180
          %183 = dma.hbm_to_vmem [thread:$0]  %s178, 128, %s181, %s167
        $region20: #{tpu_custom_call.1} parent=15 // pred_fallthru
          _
        // Predicated region
        $region21: #{tpu_custom_call.1} parent=15 // pred_check
          %p184 = pneg %p84
        $region22: #{tpu_custom_call.1} parent=15 // pred_check_branch
          %186 = sbr.rel (%p184) target = $region24
        $region23: #{tpu_custom_call.1} parent=15 // pred_region
          %s187 = sand.u32 %s74, 1
          %s188 = scalar_lea.sflag [#allocation9], %s187
          %s189 = sand.u32 %s74, 1
          %s190 = smul.addr %s189, 2
          %s191 = scalar_lea.vmem [#allocation8], %s190
          %s192 = smul.u32 2, %s30
          %s194 = ssub.s32 32, 32
          %195 = vsyncadd %s188, %s194
          %s196 = smul.addr %s29, 2
          %s197 = sadd.s32 %s192, %s196
          %s198 = smul.addr %s197, 16
          %s199 = scalar_lea.hbm %s1, %s198
          %s201 = sshll.u32 %s191, 4
          %s202 = int_to_ptr.vmem [resolvable:$true] %s201
          %204 = dma.hbm_to_vmem [thread:$0]  %s199, 32, %s202, %s188
        $region24: #{tpu_custom_call.1} parent=15 // pred_fallthru
          _
      $region16: #{tpu_custom_call.1} parent=5 // pred_fallthru
        _
      %p205 = scmp.le.s32.totalorder 1, %s22
      %p206 = scmp.lt.s32.totalorder %s22, 3
      %p207 = pnand %p205, %p206
      %p208 = pneg %p207
      // Predicated region
      $region25: #{tpu_custom_call.1} parent=5 // pred_check
        _
      $region26: #{tpu_custom_call.1} parent=5 // pred_check_branch
        %210 = sbr.rel (%p207) target = $region28
      $region27: #{tpu_custom_call.1} parent=5 // pred_region
        %s211 = ssub.s32 %s22, 1
        %s212 = sand.u32 %s49, 1
        %s213 = scalar_lea.sflag [#allocation6], %s212
        %s214 = sand.u32 %s49, 1
        %s215 = smul.addr %s214, 8
        %s216 = scalar_lea.vmem [#allocation5], %s215
        // Predicated region
        $region29: #{tpu_custom_call.1} parent=27 // pred_check
          %p217 = pneg %p62
        $region30: #{tpu_custom_call.1} parent=27 // pred_check_branch
          %219 = sbr.rel (%p217) target = $region32
        $region31: #{tpu_custom_call.1} parent=27 // pred_region
          %220 = dma.done %s213, 128
        $region32: #{tpu_custom_call.1} parent=27 // pred_fallthru
          _
        %s221 = sand.u32 %s77, 1
        %s222 = scalar_lea.sflag [#allocation9], %s221
        %s223 = sand.u32 %s77, 1
        %s224 = smul.addr %s223, 2
        %s225 = scalar_lea.vmem [#allocation8], %s224
        // Predicated region
        $region33: #{tpu_custom_call.1} parent=27 // pred_check
          %p226 = pneg %p90
        $region34: #{tpu_custom_call.1} parent=27 // pred_check_branch
          %228 = sbr.rel (%p226) target = $region36
        $region35: #{tpu_custom_call.1} parent=27 // pred_region
          %229 = dma.done %s222, 32
        $region36: #{tpu_custom_call.1} parent=27 // pred_fallthru
          _
        %s230 = sand.u32 %s49, 1
        %s231 = scalar_lea.sflag [#allocation6], %s230
        %s232 = sand.u32 %s49, 1
        %s233 = smul.addr %s232, 8
        %s234 = scalar_lea.vmem [#allocation5], %s233
        %p235 = pneg %p62
        %p236 = pneg %p59
        %s237 = sand.u32 %s77, 1
        %s238 = scalar_lea.sflag [#allocation9], %s237
        %s239 = sand.u32 %s77, 1
        %s240 = smul.addr %s239, 2
        %s241 = scalar_lea.vmem [#allocation8], %s240
        %p242 = pneg %p90
        %p243 = pneg %p87
        %p244 = pneg %p118
        %p245 = pneg %p115
        %s246 = sand.u32 %s105, 1
        %s247 = scalar_lea.sflag [#allocation7], %s246
        %s248 = sand.u32 %s105, 1
        %s249 = smul.addr %s248, 2
        %s250 = scalar_lea.vmem [#allocation10], %s249
        %p251 = pneg %p144
        %p252 = pneg %p141
        %s253 = sand.u32 %s131, 1
        %s254 = scalar_lea.sflag [#allocation12], %s253
        %s255 = sand.u32 %s131, 1
        %s256 = scalar_lea.vmem [#allocation11], %s255
        %s257 = smul.u32 2, %s32
        %s258 = smul.u32 2, %s32
        %s259 = smul.u32 2, %s32
        %p260 = scmp.eq.s32.totalorder %s32, 0
        // Predicated region
        $region37: #{tpu_custom_call.1} parent=27 // pred_check
          %p261 = pneg %p260
        $region38: #{tpu_custom_call.1} parent=27 // pred_check_branch
          %263 = sbr.rel (%p261) target = $region40
        $region39: #{tpu_custom_call.1} parent=27 // pred_region
          %vm264 = vcmask 24576
          %265 = vst.msk [vmem:[#allocation2] sm:$0x1] %vm264, 0.0
          %266 = vst.msk [vmem:[#allocation3] sm:$0x1] %vm264, 0.0
          %267 = vst.msk [vmem:[#allocation4] sm:$0x1] %vm264, 0.0
        $region40: #{tpu_custom_call.1} parent=27 // pred_fallthru
          _
        %v268 = vld [vmem:[%s216] sm:$0xff]
        %v269 = vld [vmem:[%s225] sm:$0x3]
        %v271 = vcombine.high %v268, %v268
        %vm273 = vcmask 1043456
        %v274 = vsel %vm273, %v268, -inf
        %v275 = vrot.slane %v274, 4
        %v276 = vmax.f32 %v274, %v275
        %v277 = vrot.slane %v276, 2
        %v278 = vmax.f32 %v276, %v277
        %v279 = vrot.slane %v278, 1
        %v280 = vmax.f32 %v278, %v279
        %v281 = vsel %vm273, %v271, -inf
        %v282 = vrot.slane %v281, 4
        %v283 = vmax.f32 %v281, %v282
        %v284 = vrot.slane %v283, 2
        %v285 = vmax.f32 %v283, %v284
        %v286 = vrot.slane %v285, 1
        %v287 = vmax.f32 %v285, %v286
        %v290 = vcombine.low %v280, %v287
        %v292 = vsub.f32 %v268, %v290
        %v293 = vmul.f32 %v292, 1.442695
        %v294 = vpow.pop %v293
        %v296 = vcombine.high %v294, %v294
        %v298 = vsel %vm273, %v294, 0.0
        %v299 = vrot.slane %v298, 4
        %v300 = vadd.f32 %v298, %v299
        %v301 = vrot.slane %v300, 2
        %v302 = vadd.f32 %v300, %v301
        %v303 = vrot.slane %v302, 1
        %v304 = vadd.f32 %v302, %v303
        %v305 = vsel %vm273, %v296, 0.0
        %v306 = vrot.slane %v305, 4
        %v307 = vadd.f32 %v305, %v306
        %v308 = vrot.slane %v307, 2
        %v309 = vadd.f32 %v307, %v308
        %v310 = vrot.slane %v309, 1
        %v311 = vadd.f32 %v309, %v310
        %v312 = vrcp.pop %v304
        %v313 = vrcp.pop %v311
        %v316 = vcombine.low %v312, %v313
        %v318 = vmul.f32 %v294, %v316
        %v319 = vlaneseq
        %v320 = vshrl.u32 %v319, 7
        %v321 = vlaneseq
        %v322 = vshrl.u32 %v321, 7
        %v323 = vsub.s32 0, %v322
        %v324 = vrot.slane %v269, %v323
        %v325 = vlaneseq
        %v326 = vshrl.u32 %v325, 7
        %v327 = vsub.s32 1, %v326
        %v328 = vrot.slane %v269, %v327
        %vm329 = vcmp.eq.s32.totalorder %v320, %v324
        %vm330 = vcmp.eq.s32.totalorder %v320, %v328
        %v331 = vld [vmem:[#allocation2] sm:$0x1]
        %v333 = vcombine.high %v318, %v318
        %v335 = vsel %vm329, %v318, 0.0
        %v336 = vsel %vm330, %v333, 0.0
        %v337 = vsel %vm273, %v335, 0.0
        %v338 = vsel %vm273, %v336, 0.0
        %v339 = vadd.f32 %v337, %v338
        %340 = vadd.xlane.f32.xlu0 %v339
        %v341 = vpop.xlane.xlu0 %340
        %v343 = vlaneseq
        %v344 = vshrl.u32 %v343, 7
        %v345 = vsub.s32 0, %v344
        %v346 = vrot.slane %v341, %v345
        %v347 = vlaneseq
        %v348 = vshrl.u32 %v347, 7
        %v349 = vsub.s32 1, %v348
        %v350 = vrot.slane %v341, %v349
        %v351 = vlaneseq
        %v352 = vshrl.u32 %v351, 7
        %v353 = vsub.s32 2, %v352
        %v354 = vrot.slane %v341, %v353
        %v355 = vlaneseq
        %v356 = vshrl.u32 %v355, 7
        %v357 = vsub.s32 3, %v356
        %v358 = vrot.slane %v341, %v357
        %v359 = vcombine.low %v346, %v350
        %v360 = vcombine.low %v354, %v358
        %v362 = vunpack.c.l.s4 1966171168
        %v363 = vunpack.c.0.s8 %v362
        %v364 = vlaneseq
        %v365 = vshrl.u32 %v364, 7
        %v366 = vsub.s32 %v363, %v365
        %v367 = vrot.slane %v359, %v366
        %v369 = vunpack.c.l.s4 1966171168
        %v370 = vunpack.c.0.s8 %v369
        %v371 = vlaneseq
        %v372 = vshrl.u32 %v371, 7
        %v373 = vsub.s32 %v370, %v372
        %v374 = vrot.slane %v360, %v373
        %v375 = vcombine.low %v367, %v374
        %v377 = vunpack.c.l.s4 1966171168
        %v378 = vunpack.c.0.s8 %v377
        %v379 = vlaneseq
        %v380 = vshrl.u32 %v379, 7
        %v381 = vsub.s32 %v378, %v380
        %v382 = vrot.slane %v375, %v381
        %383 = vset.pattern.permute.xlu0 0
        %384 = vperm.xlu0 %383, %v382
        %v385 = vpop.permute.xlu0 %384
        %v386 = vlaneseq
        %v387 = vand.u32 %v386, 127
        %v388 = vlaneseq
        %v389 = vshrl.u32 %v388, 7
        %v390 = vsub.s32 %v387, %v389
        %v391 = vrot.slane %v385, %v390
        %v393 = vunpack.c.l.s4 1966171168
        %v394 = vunpack.c.0.s8 %v393
        %v395 = vlaneseq
        %v396 = vshrl.u32 %v395, 7
        %v397 = vsub.s32 %v394, %v396
        %v398 = vrot.slane %v391, %v397
        %v400 = vunpack.c.l.s4 1966171168
        %v401 = vunpack.c.0.s8 %v400
        %v402 = vlaneseq
        %v403 = vshrl.u32 %v402, 7
        %v404 = vsub.s32 %v401, %v403
        %v405 = vrot.slane %v398, %v404
        %v407 = vadd.f32 %v331, %v405
        %vm408 = vcmask 24576
        %409 = vst.msk [vmem:[#allocation2] sm:$0x1] %vm408, %v407
        %v410 = vld [vmem:[#allocation3] sm:$0x1]
        %v411 = vsel %vm273, %v318, 0.0
        %v412 = vsel %vm273, %v333, 0.0
        %v413 = vadd.f32 %v411, %v412
        %414 = vadd.xlane.f32.xlu0 %v413
        %v415 = vpop.xlane.xlu0 %414
        %v417 = vlaneseq
        %v418 = vshrl.u32 %v417, 7
        %v419 = vsub.s32 0, %v418
        %v420 = vrot.slane %v415, %v419
        %v421 = vlaneseq
        %v422 = vshrl.u32 %v421, 7
        %v423 = vsub.s32 1, %v422
        %v424 = vrot.slane %v415, %v423
        %v425 = vlaneseq
        %v426 = vshrl.u32 %v425, 7
        %v427 = vsub.s32 2, %v426
        %v428 = vrot.slane %v415, %v427
        %v429 = vlaneseq
        %v430 = vshrl.u32 %v429, 7
        %v431 = vsub.s32 3, %v430
        %v432 = vrot.slane %v415, %v431
        %v433 = vcombine.low %v420, %v424
        %v434 = vcombine.low %v428, %v432
        %v436 = vunpack.c.l.s4 1966171168
        %v437 = vunpack.c.0.s8 %v436
        %v438 = vlaneseq
        %v439 = vshrl.u32 %v438, 7
        %v440 = vsub.s32 %v437, %v439
        %v441 = vrot.slane %v433, %v440
        %v443 = vunpack.c.l.s4 1966171168
        %v444 = vunpack.c.0.s8 %v443
        %v445 = vlaneseq
        %v446 = vshrl.u32 %v445, 7
        %v447 = vsub.s32 %v444, %v446
        %v448 = vrot.slane %v434, %v447
        %v449 = vcombine.low %v441, %v448
        %v451 = vunpack.c.l.s4 1966171168
        %v452 = vunpack.c.0.s8 %v451
        %v453 = vlaneseq
        %v454 = vshrl.u32 %v453, 7
        %v455 = vsub.s32 %v452, %v454
        %v456 = vrot.slane %v449, %v455
        %457 = vset.pattern.permute.xlu0 0
        %458 = vperm.xlu0 %457, %v456
        %v459 = vpop.permute.xlu0 %458
        %v460 = vlaneseq
        %v461 = vshrl.u32 %v460, 7
        %v462 = vsub.s32 %v387, %v461
        %v463 = vrot.slane %v459, %v462
        %v465 = vunpack.c.l.s4 1966171168
        %v466 = vunpack.c.0.s8 %v465
        %v467 = vlaneseq
        %v468 = vshrl.u32 %v467, 7
        %v469 = vsub.s32 %v466, %v468
        %v470 = vrot.slane %v463, %v469
        %v472 = vunpack.c.l.s4 1966171168
        %v473 = vunpack.c.0.s8 %v472
        %v474 = vlaneseq
        %v475 = vshrl.u32 %v474, 7
        %v476 = vsub.s32 %v473, %v475
        %v477 = vrot.slane %v470, %v476
        %v479 = vadd.f32 %v410, %v477
        %480 = vst.msk [vmem:[#allocation3] sm:$0x1] %vm408, %v479
        %v481 = vld [vmem:[#allocation4] sm:$0x1]
        %v482 = vsel %vm329, 1, 0
        %v483 = vsel %vm330, 1, 0
        %v484 = vcvt.s32.f32 %v482
        %v485 = vcvt.s32.f32 %v483
        %v486 = vsel %vm273, %v484, 0.0
        %v487 = vsel %vm273, %v485, 0.0
        %v488 = vadd.f32 %v486, %v487
        %489 = vadd.xlane.f32.xlu0 %v488
        %v490 = vpop.xlane.xlu0 %489
        %v492 = vlaneseq
        %v493 = vshrl.u32 %v492, 7
        %v494 = vsub.s32 0, %v493
        %v495 = vrot.slane %v490, %v494
        %v496 = vlaneseq
        %v497 = vshrl.u32 %v496, 7
        %v498 = vsub.s32 1, %v497
        %v499 = vrot.slane %v490, %v498
        %v500 = vlaneseq
        %v501 = vshrl.u32 %v500, 7
        %v502 = vsub.s32 2, %v501
        %v503 = vrot.slane %v490, %v502
        %v504 = vlaneseq
        %v505 = vshrl.u32 %v504, 7
        %v506 = vsub.s32 3, %v505
        %v507 = vrot.slane %v490, %v506
        %v508 = vcombine.low %v495, %v499
        %v509 = vcombine.low %v503, %v507
        %v511 = vunpack.c.l.s4 1966171168
        %v512 = vunpack.c.0.s8 %v511
        %v513 = vlaneseq
        %v514 = vshrl.u32 %v513, 7
        %v515 = vsub.s32 %v512, %v514
        %v516 = vrot.slane %v508, %v515
        %v518 = vunpack.c.l.s4 1966171168
        %v519 = vunpack.c.0.s8 %v518
        %v520 = vlaneseq
        %v521 = vshrl.u32 %v520, 7
        %v522 = vsub.s32 %v519, %v521
        %v523 = vrot.slane %v509, %v522
        %v524 = vcombine.low %v516, %v523
        %v526 = vunpack.c.l.s4 1966171168
        %v527 = vunpack.c.0.s8 %v526
        %v528 = vlaneseq
        %v529 = vshrl.u32 %v528, 7
        %v530 = vsub.s32 %v527, %v529
        %v531 = vrot.slane %v524, %v530
        %532 = vset.pattern.permute.xlu0 0
        %533 = vperm.xlu0 %532, %v531
        %v534 = vpop.permute.xlu0 %533
        %v535 = vlaneseq
        %v536 = vshrl.u32 %v535, 7
        %v537 = vsub.s32 %v387, %v536
        %v538 = vrot.slane %v534, %v537
        %v540 = vunpack.c.l.s4 1966171168
        %v541 = vunpack.c.0.s8 %v540
        %v542 = vlaneseq
        %v543 = vshrl.u32 %v542, 7
        %v544 = vsub.s32 %v541, %v543
        %v545 = vrot.slane %v538, %v544
        %v547 = vunpack.c.l.s4 1966171168
        %v548 = vunpack.c.0.s8 %v547
        %v549 = vlaneseq
        %v550 = vshrl.u32 %v549, 7
        %v551 = vsub.s32 %v548, %v550
        %v552 = vrot.slane %v545, %v551
        %v554 = vadd.f32 %v481, %v552
        %555 = vst.msk [vmem:[#allocation4] sm:$0x1] %vm408, %v554
        %v556 = vlog2.pop %v304
        %v557 = vmul.f32 %v556, 0.6931472
        %v558 = vlog2.pop %v311
        %v559 = vmul.f32 %v558, 0.6931472
        %v560 = vadd.f32 %v280, %v557
        %v561 = vadd.f32 %v287, %v559
        %v562 = vsel %vm329, %v268, 0.0
        %v563 = vsel %vm330, %v271, 0.0
        %v564 = vsel %vm273, %v562, 0.0
        %v565 = vrot.slane %v564, 4
        %v566 = vadd.f32 %v564, %v565
        %v567 = vrot.slane %v566, 2
        %v568 = vadd.f32 %v566, %v567
        %v569 = vrot.slane %v568, 1
        %v570 = vadd.f32 %v568, %v569
        %v571 = vsel %vm273, %v563, 0.0
        %v572 = vrot.slane %v571, 4
        %v573 = vadd.f32 %v571, %v572
        %v574 = vrot.slane %v573, 2
        %v575 = vadd.f32 %v573, %v574
        %v576 = vrot.slane %v575, 1
        %v577 = vadd.f32 %v575, %v576
        %v578 = vsub.f32 %v560, %v570
        %v579 = vsub.f32 %v561, %v577
        %v580 = vmax.f32 %v578, 0.0
        %v581 = vmax.f32 %v579, 0.0
        %v584 = vcombine.low %v580, %v581
        %v586 = vunpack.c.l.s4 1966171168
        %v587 = vunpack.c.0.s8 %v586
        %v588 = vlaneseq
        %v589 = vshrl.u32 %v588, 7
        %v590 = vsub.s32 %v587, %v589
        %v591 = vrot.slane %v584, %v590
        %v593 = vunpack.c.l.s4 1966171168
        %v594 = vunpack.c.0.s8 %v593
        %v595 = vlaneseq
        %v596 = vshrl.u32 %v595, 7
        %v597 = vsub.s32 %v594, %v596
        %v598 = vrot.slane %v591, %v597
        %v600 = vlaneseq
        %vm601 = vcmp.ge.s32.totalorder %v600, 0
        %vm602 = vcmp.lt.s32.totalorder %v600, 256
        %vm603 = vmand %vm601, %vm602
        %604 = vst.msk [vmem:[%s250] sm:$0x3] %vm603, %v598
        // Predicated region
        $region41: #{tpu_custom_call.1} parent=27 // pred_check
          %p605 = pneg %p260
        $region42: #{tpu_custom_call.1} parent=27 // pred_check_branch
          %607 = sbr.rel (%p605) target = $region44
        $region43: #{tpu_custom_call.1} parent=27 // pred_region
          %v608 = vld [vmem:[#allocation2] sm:$0x1]
          %v609 = vld [vmem:[#allocation3] sm:$0x1]
          %v610 = vmul.f32 %v609, 0.8
          %v611 = vadd.f32 %v608, %v610
          %v612 = vld [vmem:[#allocation4] sm:$0x1]
          %v613 = vmul.f32 %v612, 0.2
          %v614 = vadd.f32 %v611, %v613
          %v615 = vadd.f32 %v614, 1.0
          %v616 = vrcp.pop %v615
          %v617 = vmul.f32 %v608, %v616
          %v618 = vsub.f32 1.0, %v617
          %619 = vst.msk [vmem:[%s256] sm:$0x1] %vm408, %v618
        $region44: #{tpu_custom_call.1} parent=27 // pred_fallthru
          _
        %s620 = sand.u32 %s105, 1
        %s621 = scalar_lea.sflag [#allocation7], %s620
        %s622 = sand.u32 %s105, 1
        %s623 = smul.addr %s622, 2
        %s624 = scalar_lea.vmem [#allocation10], %s623
        %s625 = sand.u32 %s131, 1
        %s626 = scalar_lea.sflag [#allocation12], %s625
        %s627 = sand.u32 %s131, 1
        %s628 = scalar_lea.vmem [#allocation11], %s627
        // Predicated region
        $region45: #{tpu_custom_call.1} parent=27 // pred_check
          %p629 = pneg %p115
        $region46: #{tpu_custom_call.1} parent=27 // pred_check_branch
          %631 = sbr.rel (%p629) target = $region48
        $region47: #{tpu_custom_call.1} parent=27 // pred_region
          %s632 = smul.u32 2, %s32
          %s634 = ssub.s32 32, 32
          %635 = vsyncadd %s621, %s634
          %s636 = smul.addr %s31, 2
          %s637 = sadd.s32 %s632, %s636
          %s638 = smul.addr %s637, 16
          %s639 = scalar_lea.hbm %s2, %s638
          %s641 = sshll.u32 %s624, 4
          %s642 = int_to_ptr.vmem [resolvable:$true] %s641
          %644 = dma.vmem_to_hbm [thread:$0]  %s642, 32, %s639, %s621
        $region48: #{tpu_custom_call.1} parent=27 // pred_fallthru
          _
        // Predicated region
        $region49: #{tpu_custom_call.1} parent=27 // pred_check
          %p645 = pneg %p141
        $region50: #{tpu_custom_call.1} parent=27 // pred_check_branch
          %647 = sbr.rel (%p645) target = $region52
        $region51: #{tpu_custom_call.1} parent=27 // pred_region
          %s649 = ssub.s32 16, 16
          %650 = vsyncadd %s626, %s649
          %s651 = smul.addr %s31, 16
          %s652 = scalar_lea.hbm %s3, %s651
          %s654 = sshll.u32 %s628, 4
          %s655 = int_to_ptr.vmem [resolvable:$true] %s654
          %657 = dma.vmem_to_hbm [thread:$0]  %s655, 16, %s652, %s626
        $region52: #{tpu_custom_call.1} parent=27 // pred_fallthru
          _
      $region28: #{tpu_custom_call.1} parent=5 // pred_fallthru
        _
      %p658 = scmp.le.s32.totalorder 2, %s22
      // Predicated region
      $region53: #{tpu_custom_call.1} parent=5 // pred_check
        %p659 = pneg %p658
      $region54: #{tpu_custom_call.1} parent=5 // pred_check_branch
        %661 = sbr.rel (%p659) target = $region56
      $region55: #{tpu_custom_call.1} parent=5 // pred_region
        %s662 = ssub.s32 %s22, 2
        // Predicated region
        $region57: #{tpu_custom_call.1} parent=55 // pred_check
          %p663 = pneg %p121
        $region58: #{tpu_custom_call.1} parent=55 // pred_check_branch
          %665 = sbr.rel (%p663) target = $region60
        $region59: #{tpu_custom_call.1} parent=55 // pred_region
          %s666 = sand.u32 %s106, 1
          %s667 = scalar_lea.sflag [#allocation7], %s666
          %s668 = sand.u32 %s106, 1
          %s669 = smul.addr %s668, 2
          %s670 = scalar_lea.vmem [#allocation10], %s669
          %671 = dma.done %s667, 32
        $region60: #{tpu_custom_call.1} parent=55 // pred_fallthru
          _
        // Predicated region
        $region61: #{tpu_custom_call.1} parent=55 // pred_check
          %p672 = pneg %p147
        $region62: #{tpu_custom_call.1} parent=55 // pred_check_branch
          %674 = sbr.rel (%p672) target = $region64
        $region63: #{tpu_custom_call.1} parent=55 // pred_region
          %s675 = sand.u32 %s132, 1
          %s676 = scalar_lea.sflag [#allocation12], %s675
          %s677 = sand.u32 %s132, 1
          %s678 = scalar_lea.vmem [#allocation11], %s677
          %679 = dma.done %s676, 16
        $region64: #{tpu_custom_call.1} parent=55 // pred_fallthru
          _
      $region56: #{tpu_custom_call.1} parent=5 // pred_fallthru
        _
    $region6: #{tpu_custom_call.1} parent=1 // loop_footer
      %s26 = sadd.s32 1, %s22
    $region7: #{tpu_custom_call.1} parent=1 // loop_footer_branch
      %21 = sbr.rel target = $region3
    $region8: #{tpu_custom_call.1} parent=1 // loop_exit
      _
    %680 = vsyncpa [#allocation6], 1
    %s681 = scalar_lea.sflag [#allocation6], 1
    %682 = vsyncpa %s681, 1
    %683 = vsyncpa [#allocation9], 1
    %s684 = scalar_lea.sflag [#allocation9], 1
    %685 = vsyncpa %s684, 1
    %686 = vsyncpa [#allocation7], 1
    %s687 = scalar_lea.sflag [#allocation7], 1
    %688 = vsyncpa %s687, 1
    %689 = vsyncpa [#allocation12], 1
    %s690 = scalar_lea.sflag [#allocation12], 1
    %691 = vsyncpa %s690, 1

</llo_original>
